<compile_context>
chip_gen: v6e
topology: v6e:2x2x1
jax: 0.10.0
libtpu: 0.0.40
codegen_flags: <defaults>
</compile_context>

<pallas_src>
import functools

import jax
import jax.numpy as jnp
from jax import lax
from jax.experimental import pallas as pl
from jax.experimental.pallas import tpu as pltpu


def _same_pad_amounts(in_dim, kernel_size, stride):
    out_dim = (in_dim + stride - 1) // stride
    p = max(0, (out_dim - 1) * stride + kernel_size - in_dim)
    pad_left = p // 2
    pad_right = p - pad_left
    return pad_left, pad_right


def _vmem_capacity_bytes():
    """Physical VMEM of the local TPU generation (v5e/v6e: 128 MiB,
    v7x: 64 MiB per TensorCore).  Conservative fallback if the query fails."""
    try:
        cap = getattr(pltpu.get_tpu_info(), "vmem_capacity_bytes", None)
        if cap:
            return int(cap)
    except Exception:
        pass
    return 64 * 1024 * 1024


def _block_bytes(nc_tile, in_dim, out_len, l_pad, itemsize):
    # double-buffered input + output blocks, plus the padded transposed scratch
    return (2 * in_dim * nc_tile + 2 * out_len * nc_tile
            + l_pad * nc_tile) * itemsize


def _pick_nc_tile(nc_pad, in_dim, out_len, l_pad, itemsize, vmem_budget):
    """Largest sublane-aligned (multiple-of-8) divisor of nc_pad whose blocks
    fit the VMEM budget, preferring one that still leaves >= 2 grid steps
    (BlockSpec double buffering + both TensorCores on 2-TC parts)."""
    divisors = [d for d in range(8, nc_pad + 1, 8) if nc_pad % d == 0]
    if not divisors:
        return nc_pad
    fitting = [d for d in divisors
               if _block_bytes(d, in_dim, out_len, l_pad, itemsize) <= vmem_budget]
    if not fitting:
        # TODO(synk): needs L-axis halo tiling; fall back to the smallest tile.
        return divisors[0]
    multi_step = [d for d in fitting if nc_pad // d >= 2]
    return max(multi_step) if multi_step else max(fitting)


def _maxpool_same_kernel(x_ref, o_ref, xpad_ref, *, kernel_size, stride,
                         pad_left, pad_right, out_len):
    # x_ref:    (nc_tile, in_dim)   natural layout, pooled axis L on lanes
    # o_ref:    (nc_tile, out_len)  natural layout
    # xpad_ref: (l_pad, nc_tile)    SAME-padded *transposed* slab (L on sublanes)
    nc_tile, in_len = x_ref.shape

    # Zero only the padding border rows (cheap: <= kernel_size-1 rows).  Done
    # every step, not gated on program_id == 0, so megacore shards are safe.
    if pad_left > 0:
        xpad_ref[:pad_left, :] = jnp.zeros((pad_left, nc_tile), x_ref.dtype)
    if pad_right > 0:
        xpad_ref[pad_left + in_len:, :] = jnp.zeros((pad_right, nc_tile),
                                                    x_ref.dtype)

    # (nc_tile, L) -> (L, nc_tile): in-kernel XLU transpose of the VMEM tile.
    # Replaces both the old wrapper-side HBM transpose pass and the old
    # full-tile scratch copy (the transposed data has to live somewhere; the
    # scratch is that somewhere).
    xpad_ref[pad_left:pad_left + in_len, :] = jnp.transpose(x_ref[...], (1, 0))

    # kernel_size strided sublane slabs folded with a maximum tree (pure VPU
    # work -- no per-output-row XLU reductions, no masked stores).
    def slab(r):
        if stride == 1:
            return xpad_ref[r:r + out_len, :]
        return xpad_ref[pl.ds(r, out_len, stride=stride), :]

    slabs = [slab(r) for r in range(kernel_size)]
    while len(slabs) > 1:
        nxt = [jnp.maximum(slabs[i], slabs[i + 1])
               for i in range(0, len(slabs) - 1, 2)]
        if len(slabs) % 2:
            nxt.append(slabs[-1])
        slabs = nxt
    acc = slabs[0]

    # (out_len, nc_tile) -> (nc_tile, out_len): transpose back (XLU) and do a
    # single dense, lane-wide store in the natural output layout.
    o_ref[...] = jnp.transpose(acc, (1, 0)).astype(o_ref.dtype)


def max_pool1d_pad_same(x, kernel_size, stride):
    """x: (N, C, L) -> (N, C, out_len); matches MyMaxPool1dPadSame.forward."""
    n, c, in_dim = x.shape
    pad_left, pad_right = _same_pad_amounts(in_dim, kernel_size, stride)
    l_pad = in_dim + pad_left + pad_right
    out_len = (l_pad - kernel_size) // stride + 1

    nc = n * c
    x2d = x.reshape(nc, in_dim)              # free: row-major contiguous view
    nc_pad = ((nc + 7) // 8) * 8             # sublane-align the folded N*C axis
    if nc_pad != nc:
        x2d = jnp.pad(x2d, ((0, nc_pad - nc), (0, 0)))

    itemsize = jnp.dtype(x.dtype).itemsize
    vmem_cap = _vmem_capacity_bytes()
    nc_tile = _pick_nc_tile(nc_pad, in_dim, out_len, l_pad, itemsize,
                            vmem_budget=vmem_cap // 4)
    grid = (nc_pad // nc_tile,)

    block_bytes = _block_bytes(nc_tile, in_dim, out_len, l_pad, itemsize)
    vmem_limit = max(2 * block_bytes, 16 * 1024 * 1024)
    vmem_limit = min(vmem_limit, (vmem_cap * 3) // 4)
    vmem_limit = int(max(vmem_limit, block_bytes + (1 << 20)))

    kernel = functools.partial(
        _maxpool_same_kernel,
        kernel_size=kernel_size,
        stride=stride,
        pad_left=pad_left,
        pad_right=pad_right,
        out_len=out_len,
    )

    y2d = pl.pallas_call(
        kernel,
        out_shape=jax.ShapeDtypeStruct((nc_pad, out_len), x.dtype),
        grid=grid,
        in_specs=[pl.BlockSpec((nc_tile, in_dim), lambda i: (i, 0))],
        out_specs=pl.BlockSpec((nc_tile, out_len), lambda i: (i, 0)),
        scratch_shapes=[pltpu.VMEM((l_pad, nc_tile), x.dtype)],
        compiler_params=pltpu.CompilerParams(
            dimension_semantics=("parallel",),
            vmem_limit_bytes=vmem_limit),
    )(x2d)

    if nc_pad != nc:
        y2d = y2d[:nc]
    return y2d.reshape(n, c, out_len)        # free reshape back to (N, C, L')


def _reference_max_pool1d_pad_same(x, kernel_size, stride):
    """Pure-JAX reference (zero padding participates in the max, like PyTorch)."""
    pad_left, pad_right = _same_pad_amounts(x.shape[-1], kernel_size, stride)
    x_pad = jnp.pad(x, ((0, 0), (0, 0), (pad_left, pad_right)),
                    constant_values=0)
    return lax.reduce_window(x_pad, -jnp.inf, lax.max,
                             (1, 1, kernel_size), (1, 1, stride), 'VALID')


if __name__ == "__main__":
    key = jax.random.PRNGKey(0)
    # (N, C, L): deepnet-block-scale channels; L a multiple of 128 keeps the
    # lane axis (and out_len) dense; N*C = 256 gives a 2-step parallel grid.
    x = jax.random.normal(key, (4, 64, 256), dtype=jnp.float32)

    for kernel_size, stride in ((3, 2), (3, 1)):
        out = jax.block_until_ready(max_pool1d_pad_same(x, kernel_size, stride))
        ref = _reference_max_pool1d_pad_same(x, kernel_size, stride)
        assert out.shape == ref.shape, (out.shape, ref.shape)
        assert jnp.allclose(out, ref), (
            f"Pallas max-pool mismatch vs reference (k={kernel_size}, s={stride})")

    print("KERNEL_OK")
</pallas_src>

<mosaic_0001>
module attributes {stable_mosaic.version = 11 : i64} {
  func.func @_maxpool_same_kernel(%arg0: i32, %arg1: memref<128x256xf32, #tpu.memory_space<vmem>>, %arg2: memref<128x128xf32, #tpu.memory_space<vmem>>, %arg3: memref<257x128xf32, #tpu.memory_space<vmem>>) attributes {dimension_semantics = [#tpu.dimension_semantics<parallel>], iteration_bounds = array<i64: 2>, scalar_prefetch = 0 : i64, scratch_operands = 1 : i64, tpu.core_type = #tpu.core_type<tc>, window_params = [{transform_indices = @transform_0, window_bounds = array<i64: 128, 256>}, {transform_indices = @transform_1, window_bounds = array<i64: 128, 128>}]} {
    %cst = arith.constant 0.000000e+00 : f32
    %0 = vector.broadcast %cst : f32 to vector<1x128xf32>
    %c256 = arith.constant 256 : index
    %c0 = arith.constant 0 : index
    %1 = vector.load %arg3[%c256, %c0] : memref<257x128xf32, #tpu.memory_space<vmem>>, vector<1x128xf32>
    tpu.vector_store %arg3[%c256, %c0], %0 {strides = array<i32>} : memref<257x128xf32, #tpu.memory_space<vmem>>, vector<1x128xf32>,
    %c0_0 = arith.constant 0 : index
    %c0_1 = arith.constant 0 : index
    %2 = vector.load %arg1[%c0_0, %c0_1] : memref<128x256xf32, #tpu.memory_space<vmem>>, vector<128x256xf32>
    %3 = tpu.transpose %2, [1, 0] : vector<128x256xf32> -> vector<256x128xf32>
    %c0_2 = arith.constant 0 : index
    %c0_3 = arith.constant 0 : index
    %4 = vector.load %arg3[%c0_2, %c0_3] : memref<257x128xf32, #tpu.memory_space<vmem>>, vector<256x128xf32>
    tpu.vector_store %arg3[%c0_2, %c0_3], %3 {strides = array<i32>} : memref<257x128xf32, #tpu.memory_space<vmem>>, vector<256x128xf32>,
    %c0_4 = arith.constant 0 : index
    %c0_5 = arith.constant 0 : index
    %5 = tpu.strided_load %arg3[%c0_4, %c0_5] {strides = array<i32: 2, 1>} : memref<257x128xf32, #tpu.memory_space<vmem>>, vector<128x128xf32>
    %c1 = arith.constant 1 : index
    %c0_6 = arith.constant 0 : index
    %6 = tpu.strided_load %arg3[%c1, %c0_6] {strides = array<i32: 2, 1>} : memref<257x128xf32, #tpu.memory_space<vmem>>, vector<128x128xf32>
    %c2 = arith.constant 2 : index
    %c0_7 = arith.constant 0 : index
    %7 = tpu.strided_load %arg3[%c2, %c0_7] {strides = array<i32: 2, 1>} : memref<257x128xf32, #tpu.memory_space<vmem>>, vector<128x128xf32>
    %8 = arith.maximumf %5, %6 : vector<128x128xf32>
    %9 = arith.maximumf %8, %7 : vector<128x128xf32>
    %10 = tpu.transpose %9, [1, 0] : vector<128x128xf32> -> vector<128x128xf32>
    %c0_8 = arith.constant 0 : index
    %c0_9 = arith.constant 0 : index
    %11 = vector.load %arg2[%c0_8, %c0_9] : memref<128x128xf32, #tpu.memory_space<vmem>>, vector<128x128xf32>
    tpu.vector_store %arg2[%c0_8, %c0_9], %10 {strides = array<i32>} : memref<128x128xf32, #tpu.memory_space<vmem>>, vector<128x128xf32>,
    return
  }
  func.func @transform_0(%arg0: i32) -> (i32, i32) {
    %c0_i32 = arith.constant 0 : i32
    %c0_i32_0 = arith.constant 0 : i32
    return %arg0, %c0_i32 : i32, i32
  }
  func.func @transform_1(%arg0: i32) -> (i32, i32) {
    %c0_i32 = arith.constant 0 : i32
    %c0_i32_0 = arith.constant 0 : i32
    return %arg0, %c0_i32 : i32, i32
  }
}

</mosaic_0001>

<llo_original>
// kernel: tpu_custom_call.1
$region0: #{tpu_custom_call.1}
  #allocation0 [shape = 'u32[]', space=smem, size = 0x4, offset = 0x4, fixed_abs, tag = 'smem constant byte address 0x4 - core index']
  #allocation1 [shape = 'u32[144,128]{1,0:T(1,128)}', space=vmem, size = 0x12000, scoped, tag = 'internal scratch']
  #allocation2 [shape = 'f32[257,128]{1,0:T(8,128)}', space=vmem, size = 0x21000, scoped, tag = 'scratch operand']
  %s0 = inlined_call_operand.hbm [shape: f32[256,256], index: 0, kind: input, shape index: {}]
  %s1 = inlined_call_operand.hbm [shape: f32[256,128], index: 1, kind: output, shape index: {}]
  %s2 = sld [smem:[#allocation0]]
  $region41: #{tpu_custom_call.1} parent=0
    _
  %s4 = ssub.s32 1, %s2
  %s5 = scalar_select 0, %s4, %s2
  $region1: #{tpu_custom_call.1} parent=0
    #allocation3 [shape = 'u8[262144]{0}', space=vmem, size = 0x40000, scoped, tag = 'input window, operand 0']
    #allocation4 [shape = 's32[2]{0}', space=sflag, size = 0x8, scoped, tag = 'scoped memory for tpu_custom_call.1']
    #allocation5 [shape = 's32[2]{0}', space=sflag, size = 0x8, scoped, tag = 'scoped memory for tpu_custom_call.1']
    #allocation6 [shape = 'u8[131072]{0}', space=vmem, size = 0x20000, scoped, tag = 'output window, operand 0']
    %6 = vsyncpa [#allocation4], 0
    %s7 = scalar_lea.sflag [#allocation4], 1
    %8 = vsyncpa %s7, 0
    %9 = vsyncpa [#allocation5], 0
    %s10 = scalar_lea.sflag [#allocation5], 1
    %11 = vsyncpa %s10, 0
    loop: start=0, step=1, limit=4
    $region2: #{tpu_custom_call.1} parent=1 // loop_pre_header
      _
    $region3: #{tpu_custom_call.1} parent=1 // loop_header
      %s13 = sphi 0, %s17
      %p14 = scmp.ge.s32.totalorder %s13, 4
      %s23 = sphi 0, %s25
      %s26 = sphi 0, %s23
      %s27 = sphi 0, %s26
      %s43 = sphi 0, %s27
      %s49 = sphi 0, %s51
      %s52 = sphi 0, %s49
      %s53 = sphi 0, %s52
      %s69 = sphi 0, %s53
    $region4: #{tpu_custom_call.1} parent=1 // loop_header_branch
      %16 = sbr.rel (%p14) target = $region8
    $region5: #{tpu_custom_call.1} parent=1 // loop_body
      %s18 = ssub.s32 %s13, 1
      %s19 = ssub.s32 %s13, 2
      %s20 = sadd.s32 %s13, 1
      %s21 = ssub.s32 %s13, %s20
      %p22 = scmp.eq.s32.totalorder %s21, 0
      %s24 = sadd.s32 %s23, 1
      %s25 = scalar_select %p22, %s23, %s24
      %p28 = pneg %p22
      %p29 = scmp.eq.s32.totalorder %s13, 1
      %p30 = por %p28, %p29
      %p31 = scmp.ne.s32.totalorder %s23, %s26
      %p32 = scmp.eq.s32.totalorder %s13, 0
      %p33 = por %p31, %p32
      %p34 = scmp.ne.s32.totalorder %s23, %s26
      %p35 = scmp.eq.s32.totalorder %s18, 1
      %p36 = por %p34, %p35
      %p37 = scmp.ne.s32.totalorder %s26, %s27
      %p38 = scmp.eq.s32.totalorder %s18, 0
      %p39 = por %p37, %p38
      %p40 = scmp.ne.s32.totalorder %s26, %s27
      %p41 = scmp.eq.s32.totalorder %s19, 1
      %p42 = por %p40, %p41
      %p44 = scmp.ne.s32.totalorder %s27, %s43
      %p45 = scmp.eq.s32.totalorder %s19, 0
      %p46 = por %p44, %p45
      %s47 = ssub.s32 %s13, %s20
      %p48 = scmp.eq.s32.totalorder %s47, 0
      %s50 = sadd.s32 %s49, 1
      %s51 = scalar_select %p48, %s49, %s50
      %p54 = pneg %p48
      %p55 = scmp.eq.s32.totalorder %s13, 1
      %p56 = por %p54, %p55
      %p57 = scmp.ne.s32.totalorder %s49, %s52
      %p58 = scmp.eq.s32.totalorder %s13, 0
      %p59 = por %p57, %p58
      %p60 = scmp.ne.s32.totalorder %s49, %s52
      %p61 = scmp.eq.s32.totalorder %s18, 1
      %p62 = por %p60, %p61
      %p63 = scmp.ne.s32.totalorder %s52, %s53
      %p64 = scmp.eq.s32.totalorder %s18, 0
      %p65 = por %p63, %p64
      %p66 = scmp.ne.s32.totalorder %s52, %s53
      %p67 = scmp.eq.s32.totalorder %s19, 1
      %p68 = por %p66, %p67
      %p70 = scmp.ne.s32.totalorder %s53, %s69
      %p71 = scmp.eq.s32.totalorder %s19, 0
      %p72 = por %p70, %p71
      %p73 = scmp.le.s32.totalorder 1, %s13
      %p74 = scmp.lt.s32.totalorder %s13, 3
      %p75 = pnand %p73, %p74
      %p76 = pneg %p75
      // Predicated region
      $region9: #{tpu_custom_call.1} parent=5 // pred_check
        _
      $region10: #{tpu_custom_call.1} parent=5 // pred_check_branch
        %78 = sbr.rel (%p75) target = $region12
      $region11: #{tpu_custom_call.1} parent=5 // pred_region
        %s79 = ssub.s32 %s13, 1
      $region12: #{tpu_custom_call.1} parent=5 // pred_fallthru
        _
      %p80 = scmp.lt.s32.totalorder %s13, 2
      // Predicated region
      $region13: #{tpu_custom_call.1} parent=5 // pred_check
        %p81 = pneg %p80
      $region14: #{tpu_custom_call.1} parent=5 // pred_check_branch
        %83 = sbr.rel (%p81) target = $region16
      $region15: #{tpu_custom_call.1} parent=5 // pred_region
        // Predicated region
        $region17: #{tpu_custom_call.1} parent=15 // pred_check
          %p84 = pneg %p33
        $region18: #{tpu_custom_call.1} parent=15 // pred_check_branch
          %86 = sbr.rel (%p84) target = $region20
        $region19: #{tpu_custom_call.1} parent=15 // pred_region
          %s87 = sand.u32 %s23, 1
          %s88 = scalar_lea.sflag [#allocation4], %s87
          %s89 = sand.u32 %s23, 1
          %s90 = smul.addr %s89, 256
          %s91 = scalar_lea.vmem [#allocation3], %s90
          %s92 = smul.u32 16, %s13
          %s94 = ssub.s32 4096, 4096
          %95 = vsyncadd %s88, %s94
          %s96 = smul.addr %s92, 2
          %s97 = smul.addr %s96, 128
          %s98 = scalar_lea.hbm %s0, %s97
          %s99 = sshll.u32 %s91, 4
          %s100 = int_to_ptr.vmem [resolvable:$true] %s99
          %105 = dma.hbm_to_vmem [thread:$0]  %s98, 4096, %s100, %s88, 256, 256, 16
        $region20: #{tpu_custom_call.1} parent=15 // pred_fallthru
          _
      $region16: #{tpu_custom_call.1} parent=5 // pred_fallthru
        _
      %p106 = scmp.le.s32.totalorder 1, %s13
      %p107 = scmp.lt.s32.totalorder %s13, 3
      %p108 = pnand %p106, %p107
      %p109 = pneg %p108
      // Predicated region
      $region21: #{tpu_custom_call.1} parent=5 // pred_check
        _
      $region22: #{tpu_custom_call.1} parent=5 // pred_check_branch
        %111 = sbr.rel (%p108) target = $region24
      $region23: #{tpu_custom_call.1} parent=5 // pred_region
        %s112 = ssub.s32 %s13, 1
        %s113 = sand.u32 %s26, 1
        %s114 = scalar_lea.sflag [#allocation4], %s113
        %s115 = sand.u32 %s26, 1
        %s116 = smul.addr %s115, 256
        %s117 = scalar_lea.vmem [#allocation3], %s116
        // Predicated region
        $region25: #{tpu_custom_call.1} parent=23 // pred_check
          %p118 = pneg %p39
        $region26: #{tpu_custom_call.1} parent=23 // pred_check_branch
          %120 = sbr.rel (%p118) target = $region28
        $region27: #{tpu_custom_call.1} parent=23 // pred_region
          %121 = dma.done %s114, 4096
        $region28: #{tpu_custom_call.1} parent=23 // pred_fallthru
          _
        %s122 = sand.u32 %s26, 1
        %s123 = scalar_lea.sflag [#allocation4], %s122
        %s124 = sand.u32 %s26, 1
        %s125 = smul.addr %s124, 256
        %s126 = scalar_lea.vmem [#allocation3], %s125
        %p127 = pneg %p39
        %p128 = pneg %p36
        %p129 = pneg %p65
        %p130 = pneg %p62
        %s131 = sand.u32 %s52, 1
        %s132 = scalar_lea.sflag [#allocation5], %s131
        %s133 = sand.u32 %s52, 1
        %s134 = smul.addr %s133, 128
        %s135 = scalar_lea.vmem [#allocation6], %s134
        %s136 = smul.u32 16, %s18
        %s137 = smul.u32 16, %s18
        %138 = vst [vmem:[#allocation2 + $0x100] sm:$0x1] 0.0
        %v139 = vld [vmem:[%s117] sm:$0xff]
        %v140 = vld [vmem:[%s117 + $0x8] sm:$0xff]
        %v141 = vld [vmem:[%s117 + $0x10] sm:$0xff]
        %v142 = vld [vmem:[%s117 + $0x18] sm:$0xff]
        %v143 = vld [vmem:[%s117 + $0x20] sm:$0xff]
        %v144 = vld [vmem:[%s117 + $0x28] sm:$0xff]
        %v145 = vld [vmem:[%s117 + $0x30] sm:$0xff]
        %v146 = vld [vmem:[%s117 + $0x38] sm:$0xff]
        %v147 = vld [vmem:[%s117 + $0x40] sm:$0xff]
        %v148 = vld [vmem:[%s117 + $0x48] sm:$0xff]
        %v149 = vld [vmem:[%s117 + $0x50] sm:$0xff]
        %v150 = vld [vmem:[%s117 + $0x58] sm:$0xff]
        %v151 = vld [vmem:[%s117 + $0x60] sm:$0xff]
        %v152 = vld [vmem:[%s117 + $0x68] sm:$0xff]
        %v153 = vld [vmem:[%s117 + $0x70] sm:$0xff]
        %v154 = vld [vmem:[%s117 + $0x78] sm:$0xff]
        %v155 = vld [vmem:[%s117 + $0x80] sm:$0xff]
        %v156 = vld [vmem:[%s117 + $0x88] sm:$0xff]
        %v157 = vld [vmem:[%s117 + $0x90] sm:$0xff]
        %v158 = vld [vmem:[%s117 + $0x98] sm:$0xff]
        %v159 = vld [vmem:[%s117 + $0xa0] sm:$0xff]
        %v160 = vld [vmem:[%s117 + $0xa8] sm:$0xff]
        %v161 = vld [vmem:[%s117 + $0xb0] sm:$0xff]
        %v162 = vld [vmem:[%s117 + $0xb8] sm:$0xff]
        %v163 = vld [vmem:[%s117 + $0xc0] sm:$0xff]
        %v164 = vld [vmem:[%s117 + $0xc8] sm:$0xff]
        %v165 = vld [vmem:[%s117 + $0xd0] sm:$0xff]
        %v166 = vld [vmem:[%s117 + $0xd8] sm:$0xff]
        %v167 = vld [vmem:[%s117 + $0xe0] sm:$0xff]
        %v168 = vld [vmem:[%s117 + $0xe8] sm:$0xff]
        %v169 = vld [vmem:[%s117 + $0xf0] sm:$0xff]
        %v170 = vld [vmem:[%s117 + $0xf8] sm:$0xff]
        %171 = vxpose.xlu0.b32.start [1/16] %v139, 128
        %172 = vxpose.xlu0.b32.cont [2/16] %v141, 128
        %173 = vxpose.xlu0.b32.cont [3/16] %v143, 128
        %174 = vxpose.xlu0.b32.cont [4/16] %v145, 128
        %175 = vxpose.xlu0.b32.cont [5/16] %v147, 128
        %176 = vxpose.xlu0.b32.cont [6/16] %v149, 128
        %177 = vxpose.xlu0.b32.cont [7/16] %v151, 128
        %178 = vxpose.xlu0.b32.cont [8/16] %v153, 128
        %179 = vxpose.xlu0.b32.cont [9/16] %v155, 128
        %180 = vxpose.xlu0.b32.cont [10/16] %v157, 128
        %181 = vxpose.xlu0.b32.cont [11/16] %v159, 128
        %182 = vxpose.xlu0.b32.cont [12/16] %v161, 128
        %183 = vxpose.xlu0.b32.cont [13/16] %v163, 128
        %184 = vxpose.xlu0.b32.cont [14/16] %v165, 128
        %185 = vxpose.xlu0.b32.cont [15/16] %v167, 128
        %186 = vxpose.xlu0.b32.end [16/16] %v169, 128
        %v187 = vpop.trf.xlu0
        %v188 = vpop.trf.xlu0
        %v189 = vpop.trf.xlu0
        %v190 = vpop.trf.xlu0
        %v191 = vpop.trf.xlu0
        %v192 = vpop.trf.xlu0
        %v193 = vpop.trf.xlu0
        %v194 = vpop.trf.xlu0
        %v195 = vpop.trf.xlu0
        %v196 = vpop.trf.xlu0
        %v197 = vpop.trf.xlu0
        %v198 = vpop.trf.xlu0
        %v199 = vpop.trf.xlu0
        %v200 = vpop.trf.xlu0
        %v201 = vpop.trf.xlu0
        %v202 = vpop.trf.xlu0
        %203 = vxpose.xlu0.b32.start [1/16] %v140, 128
        %204 = vxpose.xlu0.b32.cont [2/16] %v142, 128
        %205 = vxpose.xlu0.b32.cont [3/16] %v144, 128
        %206 = vxpose.xlu0.b32.cont [4/16] %v146, 128
        %207 = vxpose.xlu0.b32.cont [5/16] %v148, 128
        %208 = vxpose.xlu0.b32.cont [6/16] %v150, 128
        %209 = vxpose.xlu0.b32.cont [7/16] %v152, 128
        %210 = vxpose.xlu0.b32.cont [8/16] %v154, 128
        %211 = vxpose.xlu0.b32.cont [9/16] %v156, 128
        %212 = vxpose.xlu0.b32.cont [10/16] %v158, 128
        %213 = vxpose.xlu0.b32.cont [11/16] %v160, 128
        %214 = vxpose.xlu0.b32.cont [12/16] %v162, 128
        %215 = vxpose.xlu0.b32.cont [13/16] %v164, 128
        %216 = vxpose.xlu0.b32.cont [14/16] %v166, 128
        %217 = vxpose.xlu0.b32.cont [15/16] %v168, 128
        %218 = vxpose.xlu0.b32.end [16/16] %v170, 128
        %v219 = vpop.trf.xlu0
        %v220 = vpop.trf.xlu0
        %v221 = vpop.trf.xlu0
        %v222 = vpop.trf.xlu0
        %v223 = vpop.trf.xlu0
        %v224 = vpop.trf.xlu0
        %v225 = vpop.trf.xlu0
        %v226 = vpop.trf.xlu0
        %v227 = vpop.trf.xlu0
        %v228 = vpop.trf.xlu0
        %v229 = vpop.trf.xlu0
        %v230 = vpop.trf.xlu0
        %v231 = vpop.trf.xlu0
        %v232 = vpop.trf.xlu0
        %v233 = vpop.trf.xlu0
        %v234 = vpop.trf.xlu0
        %235 = vst [vmem:[#allocation2] sm:$0xff] %v187
        %236 = vst [vmem:[#allocation2 + $0x8] sm:$0xff] %v188
        %237 = vst [vmem:[#allocation2 + $0x10] sm:$0xff] %v189
        %238 = vst [vmem:[#allocation2 + $0x18] sm:$0xff] %v190
        %239 = vst [vmem:[#allocation2 + $0x20] sm:$0xff] %v191
        %240 = vst [vmem:[#allocation2 + $0x28] sm:$0xff] %v192
        %241 = vst [vmem:[#allocation2 + $0x30] sm:$0xff] %v193
        %242 = vst [vmem:[#allocation2 + $0x38] sm:$0xff] %v194
        %243 = vst [vmem:[#allocation2 + $0x40] sm:$0xff] %v195
        %244 = vst [vmem:[#allocation2 + $0x48] sm:$0xff] %v196
        %245 = vst [vmem:[#allocation2 + $0x50] sm:$0xff] %v197
        %246 = vst [vmem:[#allocation2 + $0x58] sm:$0xff] %v198
        %247 = vst [vmem:[#allocation2 + $0x60] sm:$0xff] %v199
        %248 = vst [vmem:[#allocation2 + $0x68] sm:$0xff] %v200
        %249 = vst [vmem:[#allocation2 + $0x70] sm:$0xff] %v201
        %250 = vst [vmem:[#allocation2 + $0x78] sm:$0xff] %v202
        %251 = vst [vmem:[#allocation2 + $0x80] sm:$0xff] %v219
        %252 = vst [vmem:[#allocation2 + $0x88] sm:$0xff] %v220
        %253 = vst [vmem:[#allocation2 + $0x90] sm:$0xff] %v221
        %254 = vst [vmem:[#allocation2 + $0x98] sm:$0xff] %v222
        %255 = vst [vmem:[#allocation2 + $0xa0] sm:$0xff] %v223
        %256 = vst [vmem:[#allocation2 + $0xa8] sm:$0xff] %v224
        %257 = vst [vmem:[#allocation2 + $0xb0] sm:$0xff] %v225
        %258 = vst [vmem:[#allocation2 + $0xb8] sm:$0xff] %v226
        %259 = vst [vmem:[#allocation2 + $0xc0] sm:$0xff] %v227
        %260 = vst [vmem:[#allocation2 + $0xc8] sm:$0xff] %v228
        %261 = vst [vmem:[#allocation2 + $0xd0] sm:$0xff] %v229
        %262 = vst [vmem:[#allocation2 + $0xd8] sm:$0xff] %v230
        %263 = vst [vmem:[#allocation2 + $0xe0] sm:$0xff] %v231
        %264 = vst [vmem:[#allocation2 + $0xe8] sm:$0xff] %v232
        %265 = vst [vmem:[#allocation2 + $0xf0] sm:$0xff] %v233
        %266 = vst [vmem:[#allocation2 + $0xf8] sm:$0xff] %v234
        %v267 = vld [vmem:[#allocation2] ss:$2 sm:$0xff]
        %s268 = scalar_lea.vmem [#allocation2], 16
        %v269 = vld [vmem:[%s268] ss:$2 sm:$0xff]
        %s270 = scalar_lea.vmem [#allocation2], 32
        %v271 = vld [vmem:[%s270] ss:$2 sm:$0xff]
        %s272 = scalar_lea.vmem [#allocation2], 48
        %v273 = vld [vmem:[%s272] ss:$2 sm:$0xff]
        %s274 = scalar_lea.vmem [#allocation2], 64
        %v275 = vld [vmem:[%s274] ss:$2 sm:$0xff]
        %s276 = scalar_lea.vmem [#allocation2], 80
        %v277 = vld [vmem:[%s276] ss:$2 sm:$0xff]
        %s278 = scalar_lea.vmem [#allocation2], 96
        %v279 = vld [vmem:[%s278] ss:$2 sm:$0xff]
        %s280 = scalar_lea.vmem [#allocation2], 112
        %v281 = vld [vmem:[%s280] ss:$2 sm:$0xff]
        %s282 = scalar_lea.vmem [#allocation2], 128
        %v283 = vld [vmem:[%s282] ss:$2 sm:$0xff]
        %s284 = scalar_lea.vmem [#allocation2], 144
        %v285 = vld [vmem:[%s284] ss:$2 sm:$0xff]
        %s286 = scalar_lea.vmem [#allocation2], 160
        %v287 = vld [vmem:[%s286] ss:$2 sm:$0xff]
        %s288 = scalar_lea.vmem [#allocation2], 176
        %v289 = vld [vmem:[%s288] ss:$2 sm:$0xff]
        %s290 = scalar_lea.vmem [#allocation2], 192
        %v291 = vld [vmem:[%s290] ss:$2 sm:$0xff]
        %s292 = scalar_lea.vmem [#allocation2], 208
        %v293 = vld [vmem:[%s292] ss:$2 sm:$0xff]
        %s294 = scalar_lea.vmem [#allocation2], 224
        %v295 = vld [vmem:[%s294] ss:$2 sm:$0xff]
        %s296 = scalar_lea.vmem [#allocation2], 240
        %v297 = vld [vmem:[%s296] ss:$2 sm:$0xff]
        %s298 = scalar_lea.vmem [#allocation2], 1
        %v299 = vld [vmem:[%s298] ss:$2 sm:$0xff]
        %s300 = scalar_lea.vmem [#allocation2], 17
        %v301 = vld [vmem:[%s300] ss:$2 sm:$0xff]
        %s302 = scalar_lea.vmem [#allocation2], 33
        %v303 = vld [vmem:[%s302] ss:$2 sm:$0xff]
        %s304 = scalar_lea.vmem [#allocation2], 49
        %v305 = vld [vmem:[%s304] ss:$2 sm:$0xff]
        %s306 = scalar_lea.vmem [#allocation2], 65
        %v307 = vld [vmem:[%s306] ss:$2 sm:$0xff]
        %s308 = scalar_lea.vmem [#allocation2], 81
        %v309 = vld [vmem:[%s308] ss:$2 sm:$0xff]
        %s310 = scalar_lea.vmem [#allocation2], 97
        %v311 = vld [vmem:[%s310] ss:$2 sm:$0xff]
        %s312 = scalar_lea.vmem [#allocation2], 113
        %v313 = vld [vmem:[%s312] ss:$2 sm:$0xff]
        %s314 = scalar_lea.vmem [#allocation2], 129
        %v315 = vld [vmem:[%s314] ss:$2 sm:$0xff]
        %s316 = scalar_lea.vmem [#allocation2], 145
        %v317 = vld [vmem:[%s316] ss:$2 sm:$0xff]
        %s318 = scalar_lea.vmem [#allocation2], 161
        %v319 = vld [vmem:[%s318] ss:$2 sm:$0xff]
        %s320 = scalar_lea.vmem [#allocation2], 177
        %v321 = vld [vmem:[%s320] ss:$2 sm:$0xff]
        %s322 = scalar_lea.vmem [#allocation2], 193
        %v323 = vld [vmem:[%s322] ss:$2 sm:$0xff]
        %s324 = scalar_lea.vmem [#allocation2], 209
        %v325 = vld [vmem:[%s324] ss:$2 sm:$0xff]
        %s326 = scalar_lea.vmem [#allocation2], 225
        %v327 = vld [vmem:[%s326] ss:$2 sm:$0xff]
        %s328 = scalar_lea.vmem [#allocation2], 241
        %v329 = vld [vmem:[%s328] ss:$2 sm:$0xff]
        %s330 = scalar_lea.vmem [#allocation2], 2
        %v331 = vld [vmem:[%s330] ss:$2 sm:$0xff]
        %s332 = scalar_lea.vmem [#allocation2], 18
        %v333 = vld [vmem:[%s332] ss:$2 sm:$0xff]
        %s334 = scalar_lea.vmem [#allocation2], 34
        %v335 = vld [vmem:[%s334] ss:$2 sm:$0xff]
        %s336 = scalar_lea.vmem [#allocation2], 50
        %v337 = vld [vmem:[%s336] ss:$2 sm:$0xff]
        %s338 = scalar_lea.vmem [#allocation2], 66
        %v339 = vld [vmem:[%s338] ss:$2 sm:$0xff]
        %s340 = scalar_lea.vmem [#allocation2], 82
        %v341 = vld [vmem:[%s340] ss:$2 sm:$0xff]
        %s342 = scalar_lea.vmem [#allocation2], 98
        %v343 = vld [vmem:[%s342] ss:$2 sm:$0xff]
        %s344 = scalar_lea.vmem [#allocation2], 114
        %v345 = vld [vmem:[%s344] ss:$2 sm:$0xff]
        %s346 = scalar_lea.vmem [#allocation2], 130
        %v347 = vld [vmem:[%s346] ss:$2 sm:$0xff]
        %s348 = scalar_lea.vmem [#allocation2], 146
        %v349 = vld [vmem:[%s348] ss:$2 sm:$0xff]
        %s350 = scalar_lea.vmem [#allocation2], 162
        %v351 = vld [vmem:[%s350] ss:$2 sm:$0xff]
        %s352 = scalar_lea.vmem [#allocation2], 178
        %v353 = vld [vmem:[%s352] ss:$2 sm:$0xff]
        %s354 = scalar_lea.vmem [#allocation2], 194
        %v355 = vld [vmem:[%s354] ss:$2 sm:$0xff]
        %s356 = scalar_lea.vmem [#allocation2], 210
        %v357 = vld [vmem:[%s356] ss:$2 sm:$0xff]
        %s358 = scalar_lea.vmem [#allocation2], 226
        %v359 = vld [vmem:[%s358] ss:$2 sm:$0xff]
        %s360 = scalar_lea.vmem [#allocation2], 242
        %v361 = vld [vmem:[%s360] ss:$2 sm:$0xff]
        %v362 = vmax.f32 %v267, %v299
        %v363 = vmax.f32 %v269, %v301
        %v364 = vmax.f32 %v271, %v303
        %v365 = vmax.f32 %v273, %v305
        %v366 = vmax.f32 %v275, %v307
        %v367 = vmax.f32 %v277, %v309
        %v368 = vmax.f32 %v279, %v311
        %v369 = vmax.f32 %v281, %v313
        %v370 = vmax.f32 %v283, %v315
        %v371 = vmax.f32 %v285, %v317
        %v372 = vmax.f32 %v287, %v319
        %v373 = vmax.f32 %v289, %v321
        %v374 = vmax.f32 %v291, %v323
        %v375 = vmax.f32 %v293, %v325
        %v376 = vmax.f32 %v295, %v327
        %v377 = vmax.f32 %v297, %v329
        %v378 = vmax.f32 %v362, %v331
        %v379 = vmax.f32 %v363, %v333
        %v380 = vmax.f32 %v364, %v335
        %v381 = vmax.f32 %v365, %v337
        %v382 = vmax.f32 %v366, %v339
        %v383 = vmax.f32 %v367, %v341
        %v384 = vmax.f32 %v368, %v343
        %v385 = vmax.f32 %v369, %v345
        %v386 = vmax.f32 %v370, %v347
        %v387 = vmax.f32 %v371, %v349
        %v388 = vmax.f32 %v372, %v351
        %v389 = vmax.f32 %v373, %v353
        %v390 = vmax.f32 %v374, %v355
        %v391 = vmax.f32 %v375, %v357
        %v392 = vmax.f32 %v376, %v359
        %v393 = vmax.f32 %v377, %v361
        %394 = vxpose.xlu0.b32.start [1/16] %v378, 128
        %395 = vxpose.xlu0.b32.cont [2/16] %v379, 128
        %396 = vxpose.xlu0.b32.cont [3/16] %v380, 128
        %397 = vxpose.xlu0.b32.cont [4/16] %v381, 128
        %398 = vxpose.xlu0.b32.cont [5/16] %v382, 128
        %399 = vxpose.xlu0.b32.cont [6/16] %v383, 128
        %400 = vxpose.xlu0.b32.cont [7/16] %v384, 128
        %401 = vxpose.xlu0.b32.cont [8/16] %v385, 128
        %402 = vxpose.xlu0.b32.cont [9/16] %v386, 128
        %403 = vxpose.xlu0.b32.cont [10/16] %v387, 128
        %404 = vxpose.xlu0.b32.cont [11/16] %v388, 128
        %405 = vxpose.xlu0.b32.cont [12/16] %v389, 128
        %406 = vxpose.xlu0.b32.cont [13/16] %v390, 128
        %407 = vxpose.xlu0.b32.cont [14/16] %v391, 128
        %408 = vxpose.xlu0.b32.cont [15/16] %v392, 128
        %409 = vxpose.xlu0.b32.end [16/16] %v393, 128
        %v410 = vpop.trf.xlu0
        %v411 = vpop.trf.xlu0
        %v412 = vpop.trf.xlu0
        %v413 = vpop.trf.xlu0
        %v414 = vpop.trf.xlu0
        %v415 = vpop.trf.xlu0
        %v416 = vpop.trf.xlu0
        %v417 = vpop.trf.xlu0
        %v418 = vpop.trf.xlu0
        %v419 = vpop.trf.xlu0
        %v420 = vpop.trf.xlu0
        %v421 = vpop.trf.xlu0
        %v422 = vpop.trf.xlu0
        %v423 = vpop.trf.xlu0
        %v424 = vpop.trf.xlu0
        %v425 = vpop.trf.xlu0
        %426 = vst [vmem:[%s135] sm:$0xff] %v410
        %427 = vst [vmem:[%s135 + $0x8] sm:$0xff] %v411
        %428 = vst [vmem:[%s135 + $0x10] sm:$0xff] %v412
        %429 = vst [vmem:[%s135 + $0x18] sm:$0xff] %v413
        %430 = vst [vmem:[%s135 + $0x20] sm:$0xff] %v414
        %431 = vst [vmem:[%s135 + $0x28] sm:$0xff] %v415
        %432 = vst [vmem:[%s135 + $0x30] sm:$0xff] %v416
        %433 = vst [vmem:[%s135 + $0x38] sm:$0xff] %v417
        %434 = vst [vmem:[%s135 + $0x40] sm:$0xff] %v418
        %435 = vst [vmem:[%s135 + $0x48] sm:$0xff] %v419
        %436 = vst [vmem:[%s135 + $0x50] sm:$0xff] %v420
        %437 = vst [vmem:[%s135 + $0x58] sm:$0xff] %v421
        %438 = vst [vmem:[%s135 + $0x60] sm:$0xff] %v422
        %439 = vst [vmem:[%s135 + $0x68] sm:$0xff] %v423
        %440 = vst [vmem:[%s135 + $0x70] sm:$0xff] %v424
        %441 = vst [vmem:[%s135 + $0x78] sm:$0xff] %v425
        %s442 = sand.u32 %s52, 1
        %s443 = scalar_lea.sflag [#allocation5], %s442
        %s444 = sand.u32 %s52, 1
        %s445 = smul.addr %s444, 128
        %s446 = scalar_lea.vmem [#allocation6], %s445
        // Predicated region
        $region29: #{tpu_custom_call.1} parent=23 // pred_check
          %p447 = pneg %p62
        $region30: #{tpu_custom_call.1} parent=23 // pred_check_branch
          %449 = sbr.rel (%p447) target = $region32
        $region31: #{tpu_custom_call.1} parent=23 // pred_region
          %s450 = smul.u32 16, %s18
          %s452 = ssub.s32 2048, 2048
          %453 = vsyncadd %s443, %s452
          %s454 = smul.addr %s450, 128
          %s455 = scalar_lea.hbm %s1, %s454
          %s456 = sshll.u32 %s446, 4
          %s457 = int_to_ptr.vmem [resolvable:$true] %s456
          %462 = dma.vmem_to_hbm [thread:$0]  %s457, 2048, %s455, %s443, 128, 128, 8
        $region32: #{tpu_custom_call.1} parent=23 // pred_fallthru
          _
      $region24: #{tpu_custom_call.1} parent=5 // pred_fallthru
        _
      %p463 = scmp.le.s32.totalorder 2, %s13
      // Predicated region
      $region33: #{tpu_custom_call.1} parent=5 // pred_check
        %p464 = pneg %p463
      $region34: #{tpu_custom_call.1} parent=5 // pred_check_branch
        %466 = sbr.rel (%p464) target = $region36
      $region35: #{tpu_custom_call.1} parent=5 // pred_region
        %s467 = ssub.s32 %s13, 2
        // Predicated region
        $region37: #{tpu_custom_call.1} parent=35 // pred_check
          %p468 = pneg %p68
        $region38: #{tpu_custom_call.1} parent=35 // pred_check_branch
          %470 = sbr.rel (%p468) target = $region40
        $region39: #{tpu_custom_call.1} parent=35 // pred_region
          %s471 = sand.u32 %s53, 1
          %s472 = scalar_lea.sflag [#allocation5], %s471
          %s473 = sand.u32 %s53, 1
          %s474 = smul.addr %s473, 128
          %s475 = scalar_lea.vmem [#allocation6], %s474
          %476 = dma.done %s472, 2048
        $region40: #{tpu_custom_call.1} parent=35 // pred_fallthru
          _
      $region36: #{tpu_custom_call.1} parent=5 // pred_fallthru
        _
    $region6: #{tpu_custom_call.1} parent=1 // loop_footer
      %s17 = sadd.s32 1, %s13
    $region7: #{tpu_custom_call.1} parent=1 // loop_footer_branch
      %12 = sbr.rel target = $region3
    $region8: #{tpu_custom_call.1} parent=1 // loop_exit
      _
    %477 = vsyncpa [#allocation4], 1
    %s478 = scalar_lea.sflag [#allocation4], 1
    %479 = vsyncpa %s478, 1
    %480 = vsyncpa [#allocation5], 1
    %s481 = scalar_lea.sflag [#allocation5], 1
    %482 = vsyncpa %s481, 1

</llo_original>
